<compile_context>
chip_gen: v5e
topology: v5e:2x2
jax: 0.10.0
libtpu: 0.0.40
codegen_flags: <defaults>
</compile_context>

<pallas_src>
import jax
import jax.numpy as jnp
from jax import lax
from jax.experimental import pallas as pl
from jax.experimental.pallas import tpu as pltpu

BN_EPS = 1e-5
LANE = 128
SUBLANES_BF16 = 16            # bf16 native tile is (16, 128): 2 rows per sublane
MAX_BATCH_TILE = 1024         # 512-1024 row tiles reach ~85% of HBM roofline
DEFAULT_VMEM_LIMIT = 16 * 1024 * 1024


def _round_up(x, m):
    return (x + m - 1) // m * m


def _pad2(a, rows, cols):
    return jnp.pad(a, ((0, rows - a.shape[0]), (0, cols - a.shape[1])))


def _vmem_cap_bytes():
    """Scoped-VMEM ceiling with headroom for Mosaic internal scratch."""
    try:
        phys = int(pltpu.get_tpu_info().vmem_capacity_bytes)
    except Exception:                       # robust fallback on older runtimes
        phys = 64 * 1024 * 1024             # assume the smallest (v7x) part
    return (phys * 7) // 8                  # keep ~12.5% headroom (<=56 MiB v7x)


def _choose_batch_tiling(B, max_tile=MAX_BATCH_TILE, sub=SUBLANES_BF16):
    """Pick (tile_b, padded_B): tile <= max_tile, multiple of `sub`, padding
    within one tile, and >= 2 grid steps when splittable (v7x dual-TC)."""
    if B <= sub:
        tb = sub
    else:
        n_tiles = max(2, -(-B // max_tile))
        tb = min(max_tile, _round_up(-(-B // n_tiles), sub))
    return tb, _round_up(B, tb)


# --------------------------------------------------------------------------- #
# Kernel: one batch tile -> three MXU matmuls with f32 bias/ReLU epilogues.
# --------------------------------------------------------------------------- #
def _disc_kernel(x_ref, w1_ref, b1_ref, w2_ref, b2_ref, w3_ref, b3_ref, o_ref):
    # In-kernel cast of the f32 activation tile (avoids a wrapper-side HBM
    # round-trip; the VPU cast is free under the DMA-bound regime).
    x = x_ref[...].astype(w1_ref.dtype)

    # Linear1 (+BN folded) + ReLU
    h1 = jnp.dot(x, w1_ref[...], preferred_element_type=jnp.float32)
    h1 = jnp.maximum(h1 + b1_ref[...], 0.0)

    # Linear2 (+BN folded) + (Dropout = identity in eval) + ReLU
    h2 = jnp.dot(h1.astype(w2_ref.dtype), w2_ref[...],
                 preferred_element_type=jnp.float32)
    h2 = jnp.maximum(h2 + b2_ref[...], 0.0)

    # Linear3 (logits): narrow out_f-wide store — minimal writeback bytes.
    out = jnp.dot(h2.astype(w3_ref.dtype), w3_ref[...],
                  preferred_element_type=jnp.float32)
    o_ref[...] = (out + b3_ref[...]).astype(o_ref.dtype)


# --------------------------------------------------------------------------- #
# One-time param prep: BN fold (f32), pad ONLY hidden dims to 128, cast bf16.
# --------------------------------------------------------------------------- #
def _fold_bn(w, b, gamma, beta, mean, var):
    """Fold y = ((x@W + b) - m) * g * rsqrt(v+eps) + be  into  x@W' + b'."""
    scale = gamma * lax.rsqrt(var + BN_EPS)          # (1, out)
    return w * scale, (b - mean) * scale + beta


def prepare_params(params, compute_dtype=jnp.bfloat16):
    in_f, h1_f = params["w1"].shape
    h2_f = params["w2"].shape[1]
    out_f = params["w3"].shape[1]
    # Only the hidden (contraction) dims need 128-lane padding; in_f/out_f use
    # full-extent blocks so no extra weight/activation bytes are moved.
    h1_p, h2_p = _round_up(h1_f, LANE), _round_up(h2_f, LANE)

    w1, b1 = _fold_bn(params["w1"], params["b1"], params["g1"], params["be1"],
                      params["m1"], params["v1"])
    w2, b2 = _fold_bn(params["w2"], params["b2"], params["g2"], params["be2"],
                      params["m2"], params["v2"])
    w3, b3 = params["w3"], params["b3"]

    return dict(
        w1=_pad2(w1, in_f, h1_p).astype(compute_dtype),
        b1=_pad2(b1, 1, h1_p).astype(jnp.float32),      # bias/ReLU stay f32
        w2=_pad2(w2, h1_p, h2_p).astype(compute_dtype),
        b2=_pad2(b2, 1, h2_p).astype(jnp.float32),
        w3=_pad2(w3, h2_p, out_f).astype(compute_dtype),
        b3=b3.astype(jnp.float32),
        dims=(in_f, h1_f, h2_f, out_f),
        padded_hidden=(h1_p, h2_p),
        compute_dtype=compute_dtype,
    )


# --------------------------------------------------------------------------- #
# Forward wrapper: batch-only padding, 1-D parallel grid, resident weights.
# --------------------------------------------------------------------------- #
def discriminator_forward(z_s, prepped, *, max_tile_b=MAX_BATCH_TILE):
    B, in_f = z_s.shape
    assert in_f == prepped["dims"][0]
    out_f = prepped["dims"][3]
    h1_p, h2_p = prepped["padded_hidden"]
    cdt = prepped["compute_dtype"]

    tb, B_p = _choose_batch_tiling(B, max_tile=max_tile_b)
    x_p = z_s.astype(jnp.float32)
    if B_p != B:                                # batch-pad only; no lane pad/cast
        x_p = _pad2(x_p, B_p, in_f)

    const = lambda i: (0, 0)
    grid_spec = pltpu.PrefetchScalarGridSpec(
        num_scalar_prefetch=0,
        grid=(B_p // tb,),
        in_specs=[
            pl.BlockSpec((tb, in_f), lambda i: (i, 0)),   # x: tiled over batch
            pl.BlockSpec((in_f, h1_p), const),            # weights/biases: resident
            pl.BlockSpec((1, h1_p), const),
            pl.BlockSpec((h1_p, h2_p), const),
            pl.BlockSpec((1, h2_p), const),
            pl.BlockSpec((h2_p, out_f), const),
            pl.BlockSpec((1, out_f), const),
        ],
        out_specs=pl.BlockSpec((tb, out_f), lambda i: (i, 0)),   # narrow output
    )

    # Rough VMEM budget: double-buffered x/out tiles + resident weights/biases
    # (counted at the default 2x buffering) + live f32 intermediates.  Only
    # raise the scoped limit when needed; cap with per-generation headroom.
    isz = jnp.dtype(cdt).itemsize
    est = (2 * tb * in_f * 4
           + 2 * tb * out_f * 4
           + 2 * (in_f * h1_p + h1_p * h2_p + h2_p * out_f) * isz
           + 2 * (h1_p + h2_p + out_f) * 4
           + tb * (h1_p + h2_p) * 4)
    cp_kwargs = dict(dimension_semantics=("parallel",))
    if est > DEFAULT_VMEM_LIMIT:
        cp_kwargs["vmem_limit_bytes"] = min(2 * est, _vmem_cap_bytes())

    y = pl.pallas_call(
        _disc_kernel,
        out_shape=jax.ShapeDtypeStruct((B_p, out_f), jnp.float32),
        grid_spec=grid_spec,
        compiler_params=pltpu.CompilerParams(**cp_kwargs),
    )(x_p, prepped["w1"], prepped["b1"], prepped["w2"], prepped["b2"],
      prepped["w3"], prepped["b3"])

    return y[:B]


# --------------------------------------------------------------------------- #
# Deterministic synthetic params matching nn.Linear / nn.BatchNorm1d shapes.
# --------------------------------------------------------------------------- #
def init_params(key, input_size, h1_size, h2_size, output_size):
    ks = jax.random.split(key, 6)

    def linear(kw, kb, fan_in, fan_out):
        bound = 1.0 / jnp.sqrt(fan_in)
        # PyTorch Linear weight is (out, in); store transposed (in, out) for x @ W.
        w = jax.random.uniform(kw, (fan_in, fan_out), jnp.float32, -bound, bound)
        b = jax.random.uniform(kb, (1, fan_out), jnp.float32, -bound, bound)
        return w, b

    w1, b1 = linear(ks[0], ks[1], input_size, h1_size)
    w2, b2 = linear(ks[2], ks[3], h1_size, h2_size)
    w3, b3 = linear(ks[4], ks[5], h2_size, output_size)

    return dict(
        w1=w1, b1=b1,
        g1=jnp.ones((1, h1_size), jnp.float32), be1=jnp.zeros((1, h1_size), jnp.float32),
        m1=jnp.zeros((1, h1_size), jnp.float32), v1=jnp.ones((1, h1_size), jnp.float32),
        w2=w2, b2=b2,
        g2=jnp.ones((1, h2_size), jnp.float32), be2=jnp.zeros((1, h2_size), jnp.float32),
        m2=jnp.zeros((1, h2_size), jnp.float32), v2=jnp.ones((1, h2_size), jnp.float32),
        w3=w3, b3=b3,
    )


def _reference(z_s, p):
    """Pure-JAX f32 reference of the eval-mode forward pass."""
    h1 = z_s @ p["w1"] + p["b1"]
    h1 = (h1 - p["m1"]) / jnp.sqrt(p["v1"] + BN_EPS) * p["g1"] + p["be1"]
    h1 = jnp.maximum(h1, 0.0)
    h2 = h1 @ p["w2"] + p["b2"]
    h2 = (h2 - p["m2"]) / jnp.sqrt(p["v2"] + BN_EPS) * p["g2"] + p["be2"]
    h2 = jnp.maximum(h2, 0.0)
    return h2 @ p["w3"] + p["b3"]


if __name__ == "__main__":
    input_size, h1_size, h2_size, output_size = 32, 64, 32, 2
    batch = 8

    key = jax.random.PRNGKey(0)
    k_params, k_x = jax.random.split(key)
    params = init_params(k_params, input_size, h1_size, h2_size, output_size)
    z_s = jax.random.normal(k_x, (batch, input_size), jnp.float32)

    prepped = prepare_params(params)          # one-time: BN fold + pad + bf16 cast
    preds = discriminator_forward(z_s, prepped)
    preds = jax.block_until_ready(preds)

    ref = _reference(z_s, params)
    assert preds.shape == (batch, output_size)
    # bf16 weights/activations (f32 accumulation) -> relaxed tolerance vs f32 ref.
    assert jnp.allclose(preds, ref, atol=3e-2, rtol=3e-2), float(
        jnp.max(jnp.abs(preds - ref)))

    print("KERNEL_OK")
</pallas_src>

<mosaic_0001>
module attributes {stable_mosaic.version = 11 : i64} {
  func.func @_disc_kernel(%arg0: i32, %arg1: memref<16x32xf32, #tpu.memory_space<vmem>>, %arg2: memref<32x128xbf16, #tpu.memory_space<vmem>>, %arg3: memref<1x128xf32, #tpu.memory_space<vmem>>, %arg4: memref<128x128xbf16, #tpu.memory_space<vmem>>, %arg5: memref<1x128xf32, #tpu.memory_space<vmem>>, %arg6: memref<128x2xbf16, #tpu.memory_space<vmem>>, %arg7: memref<1x2xf32, #tpu.memory_space<vmem>>, %arg8: memref<16x2xf32, #tpu.memory_space<vmem>>) attributes {dimension_semantics = [#tpu.dimension_semantics<parallel>], iteration_bounds = array<i64: 1>, scalar_prefetch = 0 : i64, scratch_operands = 0 : i64, tpu.core_type = #tpu.core_type<tc>, window_params = [{transform_indices = @transform_0, window_bounds = array<i64: 16, 32>}, {pipeline_mode = #tpu.pipeline_mode<synchronous>, transform_indices = @transform_1, window_bounds = array<i64: 32, 128>}, {pipeline_mode = #tpu.pipeline_mode<synchronous>, transform_indices = @transform_2, window_bounds = array<i64: 1, 128>}, {pipeline_mode = #tpu.pipeline_mode<synchronous>, transform_indices = @transform_3, window_bounds = array<i64: 128, 128>}, {pipeline_mode = #tpu.pipeline_mode<synchronous>, transform_indices = @transform_4, window_bounds = array<i64: 1, 128>}, {pipeline_mode = #tpu.pipeline_mode<synchronous>, transform_indices = @transform_5, window_bounds = array<i64: 128, 2>}, {pipeline_mode = #tpu.pipeline_mode<synchronous>, transform_indices = @transform_6, window_bounds = array<i64: 1, 2>}, {transform_indices = @transform_7, window_bounds = array<i64: 16, 2>}]} {
    %c0 = arith.constant 0 : index
    %c0_0 = arith.constant 0 : index
    %0 = vector.load %arg1[%c0, %c0_0] : memref<16x32xf32, #tpu.memory_space<vmem>>, vector<16x32xf32>
    %1 = arith.truncf %0 : vector<16x32xf32> to vector<16x32xbf16>
    %c0_1 = arith.constant 0 : index
    %c0_2 = arith.constant 0 : index
    %2 = vector.load %arg2[%c0_1, %c0_2] : memref<32x128xbf16, #tpu.memory_space<vmem>>, vector<32x128xbf16>
    %cst = arith.constant dense<0.000000e+00> : vector<16x128xf32>
    %3 = tpu.matmul %1, %2, %cst {dimension_numbers = #tpu.dot_dimension_numbers<[1], [0], [0], [1], [0, 0, 1, 1], [], []>} : vector<16x32xbf16>, vector<32x128xbf16>, vector<16x128xf32> -> vector<16x128xf32>
    %c0_3 = arith.constant 0 : index
    %c0_4 = arith.constant 0 : index
    %4 = vector.load %arg3[%c0_3, %c0_4] : memref<1x128xf32, #tpu.memory_space<vmem>>, vector<1x128xf32>
    %5 = vector.broadcast %4 : vector<1x128xf32> to vector<16x128xf32>
    %6 = arith.addf %3, %5 : vector<16x128xf32>
    %cst_5 = arith.constant 0.000000e+00 : f32
    %7 = vector.broadcast %cst_5 : f32 to vector<16x128xf32>
    %8 = arith.maximumf %6, %7 : vector<16x128xf32>
    %9 = arith.truncf %8 : vector<16x128xf32> to vector<16x128xbf16>
    %c0_6 = arith.constant 0 : index
    %c0_7 = arith.constant 0 : index
    %10 = vector.load %arg4[%c0_6, %c0_7] : memref<128x128xbf16, #tpu.memory_space<vmem>>, vector<128x128xbf16>
    %cst_8 = arith.constant dense<0.000000e+00> : vector<16x128xf32>
    %11 = tpu.matmul %9, %10, %cst_8 {dimension_numbers = #tpu.dot_dimension_numbers<[1], [0], [0], [1], [0, 0, 1, 1], [], []>} : vector<16x128xbf16>, vector<128x128xbf16>, vector<16x128xf32> -> vector<16x128xf32>
    %c0_9 = arith.constant 0 : index
    %c0_10 = arith.constant 0 : index
    %12 = vector.load %arg5[%c0_9, %c0_10] : memref<1x128xf32, #tpu.memory_space<vmem>>, vector<1x128xf32>
    %13 = vector.broadcast %12 : vector<1x128xf32> to vector<16x128xf32>
    %14 = arith.addf %11, %13 : vector<16x128xf32>
    %cst_11 = arith.constant 0.000000e+00 : f32
    %15 = vector.broadcast %cst_11 : f32 to vector<16x128xf32>
    %16 = arith.maximumf %14, %15 : vector<16x128xf32>
    %17 = arith.truncf %16 : vector<16x128xf32> to vector<16x128xbf16>
    %c0_12 = arith.constant 0 : index
    %c0_13 = arith.constant 0 : index
    %18 = vector.load %arg6[%c0_12, %c0_13] : memref<128x2xbf16, #tpu.memory_space<vmem>>, vector<128x2xbf16>
    %cst_14 = arith.constant dense<0.000000e+00> : vector<16x2xf32>
    %19 = tpu.matmul %17, %18, %cst_14 {dimension_numbers = #tpu.dot_dimension_numbers<[1], [0], [0], [1], [0, 0, 1, 1], [], []>} : vector<16x128xbf16>, vector<128x2xbf16>, vector<16x2xf32> -> vector<16x2xf32>
    %c0_15 = arith.constant 0 : index
    %c0_16 = arith.constant 0 : index
    %20 = vector.load %arg7[%c0_15, %c0_16] : memref<1x2xf32, #tpu.memory_space<vmem>>, vector<1x2xf32>
    %21 = vector.broadcast %20 : vector<1x2xf32> to vector<16x2xf32>
    %22 = arith.addf %19, %21 : vector<16x2xf32>
    %c0_17 = arith.constant 0 : index
    %c0_18 = arith.constant 0 : index
    %23 = vector.load %arg8[%c0_17, %c0_18] : memref<16x2xf32, #tpu.memory_space<vmem>>, vector<16x2xf32>
    tpu.vector_store %arg8[%c0_17, %c0_18], %22 {strides = array<i32>} : memref<16x2xf32, #tpu.memory_space<vmem>>, vector<16x2xf32>,
    return
  }
  func.func @transform_0(%arg0: i32) -> (i32, i32) {
    %c0_i32 = arith.constant 0 : i32
    %c0_i32_0 = arith.constant 0 : i32
    return %arg0, %c0_i32 : i32, i32
  }
  func.func @transform_1(%arg0: i32) -> (i32, i32) {
    %c0_i32 = arith.constant 0 : i32
    %c0_i32_0 = arith.constant 0 : i32
    %c0_i32_1 = arith.constant 0 : i32
    return %c0_i32, %c0_i32_0 : i32, i32
  }
  func.func @transform_2(%arg0: i32) -> (i32, i32) {
    %c0_i32 = arith.constant 0 : i32
    %c0_i32_0 = arith.constant 0 : i32
    %c0_i32_1 = arith.constant 0 : i32
    return %c0_i32, %c0_i32_0 : i32, i32
  }
  func.func @transform_3(%arg0: i32) -> (i32, i32) {
    %c0_i32 = arith.constant 0 : i32
    %c0_i32_0 = arith.constant 0 : i32
    %c0_i32_1 = arith.constant 0 : i32
    return %c0_i32, %c0_i32_0 : i32, i32
  }
  func.func @transform_4(%arg0: i32) -> (i32, i32) {
    %c0_i32 = arith.constant 0 : i32
    %c0_i32_0 = arith.constant 0 : i32
    %c0_i32_1 = arith.constant 0 : i32
    return %c0_i32, %c0_i32_0 : i32, i32
  }
  func.func @transform_5(%arg0: i32) -> (i32, i32) {
    %c0_i32 = arith.constant 0 : i32
    %c0_i32_0 = arith.constant 0 : i32
    %c0_i32_1 = arith.constant 0 : i32
    return %c0_i32, %c0_i32_0 : i32, i32
  }
  func.func @transform_6(%arg0: i32) -> (i32, i32) {
    %c0_i32 = arith.constant 0 : i32
    %c0_i32_0 = arith.constant 0 : i32
    %c0_i32_1 = arith.constant 0 : i32
    return %c0_i32, %c0_i32_0 : i32, i32
  }
  func.func @transform_7(%arg0: i32) -> (i32, i32) {
    %c0_i32 = arith.constant 0 : i32
    %c0_i32_0 = arith.constant 0 : i32
    return %arg0, %c0_i32 : i32, i32
  }
}

</mosaic_0001>

<llo_original>
// kernel: tpu_custom_call.1
$region0: #{tpu_custom_call.1}
  #allocation0 [shape = 'u32[]', space=smem, size = 0x4, offset = 0x4, fixed_abs, tag = 'smem constant byte address 0x4 - core index']
  #allocation1 [shape = 'u32[72,128]{1,0:T(1,128)}', space=vmem, size = 0x9000, scoped, tag = 'internal scratch']
  %s0 = inlined_call_operand.hbm [shape: f32[16,32], index: 0, kind: input, shape index: {}]
  %s1 = inlined_call_operand.hbm [shape: bf16[32,128], index: 1, kind: input, shape index: {}]
  %s2 = inlined_call_operand.vmem [shape: f32[1,128], index: 2, kind: input, shape index: {}]
  %s3 = inlined_call_operand.vmem [shape: bf16[128,128], index: 3, kind: input, shape index: {}]
  %s4 = inlined_call_operand.vmem [shape: f32[1,128], index: 4, kind: input, shape index: {}]
  %s5 = inlined_call_operand.vmem [shape: bf16[128,2], index: 5, kind: input, shape index: {}]
  %s6 = inlined_call_operand.vmem [shape: f32[1,2], index: 6, kind: input, shape index: {}]
  %s7 = inlined_call_operand.vmem [shape: f32[16,2], index: 7, kind: output, shape index: {}]
  %s8 = sld [smem:[#allocation0]]
  $region46: #{tpu_custom_call.1} parent=0
    _
  %s10 = ssub.s32 1, %s8
  %s11 = scalar_select 0, %s10, %s8
  $region1: #{tpu_custom_call.1} parent=0
    #allocation2 [shape = 'u8[8192]{0}', space=vmem, size = 0x2000, scoped, tag = 'input window, operand 0, single buffered']
    #allocation3 [shape = 's32[1]{0}', space=sflag, size = 0x4, scoped, tag = 'scoped memory for tpu_custom_call.1']
    #allocation4 [shape = 'u8[8192]{0}', space=vmem, size = 0x2000, scoped, tag = 'input window, operand 1, single buffered']
    #allocation5 [shape = 's32[1]{0}', space=sflag, size = 0x4, scoped, tag = 'scoped memory for tpu_custom_call.1']
    %12 = vsyncpa [#allocation3], 0
    %13 = vsyncpa [#allocation5], 0
    // Predicated region
    $region2: #{tpu_custom_call.1} parent=1 // pred_check
      _
    $region3: #{tpu_custom_call.1} parent=1 // pred_check_branch
      %15 = sbr.rel (0) target = $region5
    $region4: #{tpu_custom_call.1} parent=1 // pred_region
      %17 = vsyncadd [#allocation3], 0
      %s18 = sshll.u32 %s0, 4
      %s19 = int_to_ptr.hbm [resolvable:$true] %s18
      %s20 = sshll.u32 [#allocation2], 4
      %s21 = int_to_ptr.vmem [resolvable:$true] %s20
      %26 = dma.hbm_to_vmem [thread:$0]  %s19, 256, %s21, [#allocation3], 128, 128, 8
    $region5: #{tpu_custom_call.1} parent=1 // pred_fallthru
      _
    // Predicated region
    $region6: #{tpu_custom_call.1} parent=1 // pred_check
      _
    $region7: #{tpu_custom_call.1} parent=1 // pred_check_branch
      %28 = sbr.rel (0) target = $region9
    $region8: #{tpu_custom_call.1} parent=1 // pred_region
      %30 = vsyncadd [#allocation5], 0
      %s31 = sshll.u32 %s1, 4
      %s32 = int_to_ptr.hbm [resolvable:$true] %s31
      %s33 = sshll.u32 [#allocation4], 4
      %s34 = int_to_ptr.vmem [resolvable:$true] %s33
      %39 = dma.hbm_to_vmem [thread:$0]  %s32, 256, %s34, [#allocation5], 64, 64, 4
    $region9: #{tpu_custom_call.1} parent=1 // pred_fallthru
      _
    // Predicated region
    $region10: #{tpu_custom_call.1} parent=1 // pred_check
      _
    $region11: #{tpu_custom_call.1} parent=1 // pred_check_branch
      %41 = sbr.rel (0) target = $region13
    $region12: #{tpu_custom_call.1} parent=1 // pred_region
      _
    $region13: #{tpu_custom_call.1} parent=1 // pred_fallthru
      _
    // Predicated region
    $region14: #{tpu_custom_call.1} parent=1 // pred_check
      _
    $region15: #{tpu_custom_call.1} parent=1 // pred_check_branch
      %43 = sbr.rel (0) target = $region17
    $region16: #{tpu_custom_call.1} parent=1 // pred_region
      _
    $region17: #{tpu_custom_call.1} parent=1 // pred_fallthru
      _
    // Predicated region
    $region18: #{tpu_custom_call.1} parent=1 // pred_check
      _
    $region19: #{tpu_custom_call.1} parent=1 // pred_check_branch
      %45 = sbr.rel (0) target = $region21
    $region20: #{tpu_custom_call.1} parent=1 // pred_region
      _
    $region21: #{tpu_custom_call.1} parent=1 // pred_fallthru
      _
    // Predicated region
    $region22: #{tpu_custom_call.1} parent=1 // pred_check
      _
    $region23: #{tpu_custom_call.1} parent=1 // pred_check_branch
      %47 = sbr.rel (0) target = $region25
    $region24: #{tpu_custom_call.1} parent=1 // pred_region
      _
    $region25: #{tpu_custom_call.1} parent=1 // pred_fallthru
      _
    // Predicated region
    $region26: #{tpu_custom_call.1} parent=1 // pred_check
      _
    $region27: #{tpu_custom_call.1} parent=1 // pred_check_branch
      %49 = sbr.rel (0) target = $region29
    $region28: #{tpu_custom_call.1} parent=1 // pred_region
      _
    $region29: #{tpu_custom_call.1} parent=1 // pred_fallthru
      _
    // Predicated region
    $region30: #{tpu_custom_call.1} parent=1 // pred_check
      _
    $region31: #{tpu_custom_call.1} parent=1 // pred_check_branch
      %51 = sbr.rel (0) target = $region33
    $region32: #{tpu_custom_call.1} parent=1 // pred_region
      %53 = dma.done [#allocation3], 256
    $region33: #{tpu_custom_call.1} parent=1 // pred_fallthru
      _
    // Predicated region
    $region34: #{tpu_custom_call.1} parent=1 // pred_check
      _
    $region35: #{tpu_custom_call.1} parent=1 // pred_check_branch
      %55 = sbr.rel (0) target = $region37
    $region36: #{tpu_custom_call.1} parent=1 // pred_region
      %57 = dma.done [#allocation5], 256
    $region37: #{tpu_custom_call.1} parent=1 // pred_fallthru
      _
    %v59 = vld [vmem:[#allocation2] sm:$0xff]
    %v60 = vld [vmem:[#allocation2 + $0x8] sm:$0xff]
    %v61 = vpack.c.bf16 %v60, %v59
    %v62 = vld [vmem:[#allocation4] sm:$0xf]
    %v63 = vld [vmem:[#allocation4 + $0x4] sm:$0xf]
    %v64 = vld [vmem:[#allocation4 + $0x8] sm:$0xf]
    %v65 = vld [vmem:[#allocation4 + $0xc] sm:$0xf]
    %v66 = vld [vmem:[%s2] sm:$0x1]
    %v68 = vperm.slane %v66, 0
    %v74 = vunpack.c.l.b16 %v62
    %v75 = vunpack.c.l.b16 %v63
    %v76 = vunpack.c.l.b16 %v64
    %v77 = vunpack.c.l.b16 %v65
    %v78 = vpack.c.b16 %v75, %v74
    %v79 = vpack.c.b16 %v77, %v76
    %vm82 = vcmask 261120
    %v84 = vsel %vm82, %v61, 0
    %86 = vmatpush.bf16.msra.mxu0 0
    %87 = vmatpush.bf16.msra.mxu0 0
    %88 = vmatpush.bf16.msra.mxu0 0
    %89 = vmatpush.bf16.msra.mxu0 0
    %90 = vmatpush.bf16.msra.mxu0 0
    %91 = vmatpush.bf16.msra.mxu0 0
    %92 = vmatpush.bf16.msra.mxu0 %v79
    %93 = vmatpush.bf16.msra.mxu0 %v78
    %94 = vmatmul.bf16.gmra.mxu0 %v84
    %v95 = vpop.f32.mrf.mxu0
    %v96 = vadd.f32 %v68, %v95
    %v97 = vpop.f32.mrf.mxu0
    %v98 = vadd.f32 %v68, %v97
    %99 = vdwg.mxu0
    %v100 = vmax.f32 %v96, 0.0
    %v101 = vmax.f32 %v98, 0.0
    %v102 = vpack.c.bf16 %v101, %v100
    %v103 = vld [vmem:[%s3] sm:$0xf]
    %v104 = vld [vmem:[%s3 + $0x4] sm:$0xf]
    %v105 = vld [vmem:[%s3 + $0x8] sm:$0xf]
    %v106 = vld [vmem:[%s3 + $0xc] sm:$0xf]
    %v107 = vld [vmem:[%s3 + $0x10] sm:$0xf]
    %v108 = vld [vmem:[%s3 + $0x14] sm:$0xf]
    %v109 = vld [vmem:[%s3 + $0x18] sm:$0xf]
    %v110 = vld [vmem:[%s3 + $0x1c] sm:$0xf]
    %v111 = vld [vmem:[%s3 + $0x20] sm:$0xf]
    %v112 = vld [vmem:[%s3 + $0x24] sm:$0xf]
    %v113 = vld [vmem:[%s3 + $0x28] sm:$0xf]
    %v114 = vld [vmem:[%s3 + $0x2c] sm:$0xf]
    %v115 = vld [vmem:[%s3 + $0x30] sm:$0xf]
    %v116 = vld [vmem:[%s3 + $0x34] sm:$0xf]
    %v117 = vld [vmem:[%s3 + $0x38] sm:$0xf]
    %v118 = vld [vmem:[%s3 + $0x3c] sm:$0xf]
    %v119 = vld [vmem:[%s4] sm:$0x1]
    %v121 = vperm.slane %v119, 0
    %v139 = vunpack.c.l.b16 %v103
    %v140 = vunpack.c.l.b16 %v104
    %v141 = vunpack.c.l.b16 %v105
    %v142 = vunpack.c.l.b16 %v106
    %v143 = vunpack.c.l.b16 %v107
    %v144 = vunpack.c.l.b16 %v108
    %v145 = vunpack.c.l.b16 %v109
    %v146 = vunpack.c.l.b16 %v110
    %v147 = vunpack.c.l.b16 %v111
    %v148 = vunpack.c.l.b16 %v112
    %v149 = vunpack.c.l.b16 %v113
    %v150 = vunpack.c.l.b16 %v114
    %v151 = vunpack.c.l.b16 %v115
    %v152 = vunpack.c.l.b16 %v116
    %v153 = vunpack.c.l.b16 %v117
    %v154 = vunpack.c.l.b16 %v118
    %v155 = vpack.c.b16 %v140, %v139
    %v156 = vpack.c.b16 %v142, %v141
    %v157 = vpack.c.b16 %v144, %v143
    %v158 = vpack.c.b16 %v146, %v145
    %v159 = vpack.c.b16 %v148, %v147
    %v160 = vpack.c.b16 %v150, %v149
    %v161 = vpack.c.b16 %v152, %v151
    %v162 = vpack.c.b16 %v154, %v153
    %171 = vmatpush.bf16.msra.mxu0 %v162
    %172 = vmatpush.bf16.msra.mxu0 %v161
    %173 = vmatpush.bf16.msra.mxu0 %v160
    %174 = vmatpush.bf16.msra.mxu0 %v159
    %175 = vmatpush.bf16.msra.mxu0 %v158
    %176 = vmatpush.bf16.msra.mxu0 %v157
    %177 = vmatpush.bf16.msra.mxu0 %v156
    %178 = vmatpush.bf16.msra.mxu0 %v155
    %179 = vmatmul.bf16.gmra.mxu0 %v102
    %v180 = vpop.f32.mrf.mxu0
    %v181 = vadd.f32 %v121, %v180
    %v182 = vpop.f32.mrf.mxu0
    %v183 = vadd.f32 %v121, %v182
    %184 = vdwg.mxu0
    %v185 = vmax.f32 %v181, 0.0
    %v186 = vmax.f32 %v183, 0.0
    %v187 = vpack.c.bf16 %v186, %v185
    %v188 = vld [vmem:[%s5] sm:$0xf]
    %v189 = vld [vmem:[%s5 + $0x4] sm:$0xf]
    %v190 = vld [vmem:[%s5 + $0x8] sm:$0xf]
    %v191 = vld [vmem:[%s5 + $0xc] sm:$0xf]
    %v192 = vld [vmem:[%s5 + $0x10] sm:$0xf]
    %v193 = vld [vmem:[%s5 + $0x14] sm:$0xf]
    %v194 = vld [vmem:[%s5 + $0x18] sm:$0xf]
    %v195 = vld [vmem:[%s5 + $0x1c] sm:$0xf]
    %v196 = vld [vmem:[%s5 + $0x20] sm:$0xf]
    %v197 = vld [vmem:[%s5 + $0x24] sm:$0xf]
    %v198 = vld [vmem:[%s5 + $0x28] sm:$0xf]
    %v199 = vld [vmem:[%s5 + $0x2c] sm:$0xf]
    %v200 = vld [vmem:[%s5 + $0x30] sm:$0xf]
    %v201 = vld [vmem:[%s5 + $0x34] sm:$0xf]
    %v202 = vld [vmem:[%s5 + $0x38] sm:$0xf]
    %v203 = vld [vmem:[%s5 + $0x3c] sm:$0xf]
    %v204 = vld [vmem:[%s6] sm:$0x1]
    %v206 = vperm.slane %v204, 0
    %v224 = vunpack.c.l.b16 %v188
    %v225 = vunpack.c.l.b16 %v189
    %v226 = vunpack.c.l.b16 %v190
    %v227 = vunpack.c.l.b16 %v191
    %v228 = vunpack.c.l.b16 %v192
    %v229 = vunpack.c.l.b16 %v193
    %v230 = vunpack.c.l.b16 %v194
    %v231 = vunpack.c.l.b16 %v195
    %v232 = vunpack.c.l.b16 %v196
    %v233 = vunpack.c.l.b16 %v197
    %v234 = vunpack.c.l.b16 %v198
    %v235 = vunpack.c.l.b16 %v199
    %v236 = vunpack.c.l.b16 %v200
    %v237 = vunpack.c.l.b16 %v201
    %v238 = vunpack.c.l.b16 %v202
    %v239 = vunpack.c.l.b16 %v203
    %v240 = vpack.c.b16 %v225, %v224
    %v241 = vpack.c.b16 %v227, %v226
    %v242 = vpack.c.b16 %v229, %v228
    %v243 = vpack.c.b16 %v231, %v230
    %v244 = vpack.c.b16 %v233, %v232
    %v245 = vpack.c.b16 %v235, %v234
    %v246 = vpack.c.b16 %v237, %v236
    %v247 = vpack.c.b16 %v239, %v238
    %256 = vmatpush.bf16.msra.mxu0 %v247
    %257 = vmatpush.bf16.msra.mxu0 %v246
    %258 = vmatpush.bf16.msra.mxu0 %v245
    %259 = vmatpush.bf16.msra.mxu0 %v244
    %260 = vmatpush.bf16.msra.mxu0 %v243
    %261 = vmatpush.bf16.msra.mxu0 %v242
    %262 = vmatpush.bf16.msra.mxu0 %v241
    %263 = vmatpush.bf16.msra.mxu0 %v240
    %264 = vmatmul.bf16.gmra.mxu0 %v187
    %v265 = vpop.f32.mrf.mxu0
    %v266 = vadd.f32 %v206, %v265
    %v267 = vpop.f32.mrf.mxu0
    %v268 = vadd.f32 %v206, %v267
    %269 = vdwg.mxu0
    %vm270 = vcmask 15360
    %271 = vst.msk [vmem:[%s7] sm:$0xff] %vm270, %v266
    %272 = vst.msk [vmem:[%s7 + $0x8] sm:$0xff] %vm270, %v268
    // Predicated region
    $region38: #{tpu_custom_call.1} parent=1 // pred_check
      _
    $region39: #{tpu_custom_call.1} parent=1 // pred_check_branch
      %274 = sbr.rel (0) target = $region41
    $region40: #{tpu_custom_call.1} parent=1 // pred_region
      _
    $region41: #{tpu_custom_call.1} parent=1 // pred_fallthru
      _
    // Predicated region
    $region42: #{tpu_custom_call.1} parent=1 // pred_check
      _
    $region43: #{tpu_custom_call.1} parent=1 // pred_check_branch
      %276 = sbr.rel (0) target = $region45
    $region44: #{tpu_custom_call.1} parent=1 // pred_region
      _
    $region45: #{tpu_custom_call.1} parent=1 // pred_fallthru
      _
    %277 = vsyncpa [#allocation3], 1
    %278 = vsyncpa [#allocation5], 1

</llo_original>
